<compile_context>
chip_gen: v5e
topology: v5e:2x2
jax: 0.10.0
libtpu: 0.0.40
codegen_flags: <defaults>
</compile_context>

<pallas_src>
import functools

import jax
import jax.numpy as jnp
from jax.experimental import pallas as pl
from jax.experimental.pallas import tpu as pltpu

STATE_SIZE = 12 * 4   # 48
HIDDEN = 128
ACTION_SIZE = 1


def actor_kernel(x_ref, w1_ref, b1_ref, w2_ref, b2_ref, out_ref):
    # x:  [TB, 48]  bf16      w1: [48, 128] bf16    b1: [1, 128] f32
    # w2: [1, 128]  f32       b2: [1, 1]    f32 (SMEM)
    # out: [TB, 1]  f32
    h = jnp.dot(x_ref[...], w1_ref[...],
                preferred_element_type=jnp.float32) + b1_ref[...]
    h = jnp.maximum(h, 0.0)                                    # relu
    # mu head (N=1): VPU multiply + lane reduction instead of an MXU matmul
    # with 1 of 128 output columns.
    y = jnp.sum(h * w2_ref[...], axis=-1, keepdims=True) + b2_ref[0, 0]
    out_ref[...] = jnp.tanh(y)                                 # tanh head


def _round_up(x, m):
    return ((x + m - 1) // m) * m


@functools.partial(jax.jit, static_argnames=("tb",))
def actor_forward(state, w1, b1, w2, b2, *, tb=512):
    """state: [B, 48] f32. Returns [B, 1] f32."""
    B = state.shape[0]
    TB = min(tb, _round_up(B, 8))          # batch tile (sublane-aligned)
    Bp = _round_up(B, TB)                  # pad batch to a whole number of tiles

    x = state.astype(jnp.bfloat16)
    if Bp != B:
        x = jnp.pad(x, ((0, Bp - B), (0, 0)))

    w1_bf = w1.astype(jnp.bfloat16)                       # [48, 128]
    b1_row = b1.reshape(1, HIDDEN).astype(jnp.float32)    # [1, 128]
    w2_row = w2.reshape(1, HIDDEN).astype(jnp.float32)    # [128,1] -> [1,128]
    b2_s = b2.reshape(1, 1).astype(jnp.float32)           # [1, 1] scalar

    out = pl.pallas_call(
        actor_kernel,
        out_shape=jax.ShapeDtypeStruct((Bp, ACTION_SIZE), jnp.float32),
        grid=(Bp // TB,),
        in_specs=[
            pl.BlockSpec((TB, STATE_SIZE), lambda i: (i, 0)),        # state tile
            pl.BlockSpec((STATE_SIZE, HIDDEN), lambda i: (0, 0)),    # w1 resident
            pl.BlockSpec((1, HIDDEN), lambda i: (0, 0)),             # b1 resident
            pl.BlockSpec((1, HIDDEN), lambda i: (0, 0)),             # w2 row resident
            pl.BlockSpec((1, 1), lambda i: (0, 0),
                         memory_space=pltpu.MemorySpace.SMEM),       # b2 scalar
        ],
        out_specs=pl.BlockSpec((TB, ACTION_SIZE), lambda i: (i, 0)),
        compiler_params=pltpu.CompilerParams(
            dimension_semantics=("parallel",)),
    )(x, w1_bf, b1_row, w2_row, b2_s)

    return out[:B]


def init_params(key):
    # PyTorch Linear default init: U(-1/sqrt(fan_in), 1/sqrt(fan_in))
    k1, k2, k3, k4 = jax.random.split(key, 4)
    bound1 = 1.0 / jnp.sqrt(jnp.float32(STATE_SIZE))
    bound2 = 1.0 / jnp.sqrt(jnp.float32(HIDDEN))
    w1 = jax.random.uniform(k1, (STATE_SIZE, HIDDEN), jnp.float32, -bound1, bound1)
    b1 = jax.random.uniform(k2, (HIDDEN,), jnp.float32, -bound1, bound1)
    w2 = jax.random.uniform(k3, (HIDDEN, ACTION_SIZE), jnp.float32, -bound2, bound2)
    b2 = jax.random.uniform(k4, (ACTION_SIZE,), jnp.float32, -bound2, bound2)
    return w1, b1, w2, b2


def reference_forward(state, w1, b1, w2, b2):
    # Mirrors the kernel's bf16 input casts (f32 accumulation), as the kernel
    # intentionally streams state/w1 in bf16.
    x = state.astype(jnp.bfloat16).astype(jnp.float32)
    w1f = w1.astype(jnp.bfloat16).astype(jnp.float32)
    h = jnp.maximum(x @ w1f + b1.reshape(1, -1), 0.0)
    return jnp.tanh(h @ w2 + b2.reshape(1, -1))


if __name__ == "__main__":
    key = jax.random.PRNGKey(0)
    k_params, k_s1, k_s2 = jax.random.split(key, 3)
    w1, b1, w2, b2 = init_params(k_params)

    # Small per-env-step batch (single grid step).
    B = 8
    state = jax.random.normal(k_s1, (B, STATE_SIZE), jnp.float32)
    out = jax.block_until_ready(actor_forward(state, w1, b1, w2, b2))
    ref = reference_forward(state, w1, b1, w2, b2)
    assert out.shape == (B, ACTION_SIZE)
    assert jnp.allclose(out, ref, atol=1e-4, rtol=1e-4)

    # Ragged larger batch: exercises the tiled grid + padding/slicing path.
    B2 = 520
    state2 = jax.random.normal(k_s2, (B2, STATE_SIZE), jnp.float32)
    out2 = jax.block_until_ready(actor_forward(state2, w1, b1, w2, b2, tb=256))
    ref2 = reference_forward(state2, w1, b1, w2, b2)
    assert out2.shape == (B2, ACTION_SIZE)
    assert jnp.allclose(out2, ref2, atol=1e-4, rtol=1e-4)

    print("KERNEL_OK")
</pallas_src>

<mosaic_0001>
module attributes {stable_mosaic.version = 11 : i64} {
  func.func @actor_kernel(%arg0: i32, %arg1: memref<8x48xbf16, #tpu.memory_space<vmem>>, %arg2: memref<48x128xbf16, #tpu.memory_space<vmem>>, %arg3: memref<1x128xf32, #tpu.memory_space<vmem>>, %arg4: memref<1x128xf32, #tpu.memory_space<vmem>>, %arg5: memref<1x1xf32, #tpu.memory_space<smem>>, %arg6: memref<8x1xf32, #tpu.memory_space<vmem>>) attributes {dimension_semantics = [#tpu.dimension_semantics<parallel>], iteration_bounds = array<i64: 1>, scalar_prefetch = 0 : i64, scratch_operands = 0 : i64, tpu.core_type = #tpu.core_type<tc>, window_params = [{transform_indices = @transform_0, window_bounds = array<i64: 8, 48>}, {pipeline_mode = #tpu.pipeline_mode<synchronous>, transform_indices = @transform_1, window_bounds = array<i64: 48, 128>}, {pipeline_mode = #tpu.pipeline_mode<synchronous>, transform_indices = @transform_2, window_bounds = array<i64: 1, 128>}, {pipeline_mode = #tpu.pipeline_mode<synchronous>, transform_indices = @transform_3, window_bounds = array<i64: 1, 128>}, {transform_indices = @transform_4, window_bounds = array<i64: 1, 1>}, {transform_indices = @transform_5, window_bounds = array<i64: 8, 1>}]} {
    %c0 = arith.constant 0 : index
    %c0_0 = arith.constant 0 : index
    %0 = vector.load %arg1[%c0, %c0_0] : memref<8x48xbf16, #tpu.memory_space<vmem>>, vector<8x48xbf16>
    %c0_1 = arith.constant 0 : index
    %c0_2 = arith.constant 0 : index
    %1 = vector.load %arg2[%c0_1, %c0_2] : memref<48x128xbf16, #tpu.memory_space<vmem>>, vector<48x128xbf16>
    %cst = arith.constant dense<0.000000e+00> : vector<8x128xf32>
    %2 = tpu.matmul %0, %1, %cst {dimension_numbers = #tpu.dot_dimension_numbers<[1], [0], [0], [1], [0, 0, 1, 1], [], []>} : vector<8x48xbf16>, vector<48x128xbf16>, vector<8x128xf32> -> vector<8x128xf32>
    %c0_3 = arith.constant 0 : index
    %c0_4 = arith.constant 0 : index
    %3 = vector.load %arg3[%c0_3, %c0_4] : memref<1x128xf32, #tpu.memory_space<vmem>>, vector<1x128xf32>
    %4 = vector.broadcast %3 : vector<1x128xf32> to vector<8x128xf32>
    %5 = arith.addf %2, %4 : vector<8x128xf32>
    %cst_5 = arith.constant 0.000000e+00 : f32
    %6 = vector.broadcast %cst_5 : f32 to vector<8x128xf32>
    %7 = arith.maximumf %5, %6 : vector<8x128xf32>
    %c0_6 = arith.constant 0 : index
    %c0_7 = arith.constant 0 : index
    %8 = vector.load %arg4[%c0_6, %c0_7] : memref<1x128xf32, #tpu.memory_space<vmem>>, vector<1x128xf32>
    %9 = vector.broadcast %8 : vector<1x128xf32> to vector<8x128xf32>
    %10 = arith.mulf %7, %9 : vector<8x128xf32>
    %cst_8 = arith.constant dense<0.000000e+00> : vector<8xf32>
    %11 = vector.multi_reduction <add>, %10, %cst_8 [1] : vector<8x128xf32> to vector<8xf32>
    %12 = vector.shape_cast %11 : vector<8xf32> to vector<8x1xf32>
    %c0_9 = arith.constant 0 : index
    %c0_10 = arith.constant 0 : index
    %13 = memref.load %arg5[%c0_9, %c0_10] : memref<1x1xf32, #tpu.memory_space<smem>>
    %14 = vector.broadcast %13 : f32 to vector<8x1xf32>
    %15 = arith.addf %12, %14 : vector<8x1xf32>
    %16 = math.tanh %15 : vector<8x1xf32>
    %c0_11 = arith.constant 0 : index
    %c0_12 = arith.constant 0 : index
    %17 = vector.load %arg6[%c0_11, %c0_12] : memref<8x1xf32, #tpu.memory_space<vmem>>, vector<8x1xf32>
    tpu.vector_store %arg6[%c0_11, %c0_12], %16 {strides = array<i32>} : memref<8x1xf32, #tpu.memory_space<vmem>>, vector<8x1xf32>,
    return
  }
  func.func @transform_0(%arg0: i32) -> (i32, i32) {
    %c0_i32 = arith.constant 0 : i32
    %c0_i32_0 = arith.constant 0 : i32
    return %arg0, %c0_i32 : i32, i32
  }
  func.func @transform_1(%arg0: i32) -> (i32, i32) {
    %c0_i32 = arith.constant 0 : i32
    %c0_i32_0 = arith.constant 0 : i32
    %c0_i32_1 = arith.constant 0 : i32
    return %c0_i32, %c0_i32_0 : i32, i32
  }
  func.func @transform_2(%arg0: i32) -> (i32, i32) {
    %c0_i32 = arith.constant 0 : i32
    %c0_i32_0 = arith.constant 0 : i32
    %c0_i32_1 = arith.constant 0 : i32
    return %c0_i32, %c0_i32_0 : i32, i32
  }
  func.func @transform_3(%arg0: i32) -> (i32, i32) {
    %c0_i32 = arith.constant 0 : i32
    %c0_i32_0 = arith.constant 0 : i32
    %c0_i32_1 = arith.constant 0 : i32
    return %c0_i32, %c0_i32_0 : i32, i32
  }
  func.func @transform_4(%arg0: i32) -> (i32, i32) {
    %c0_i32 = arith.constant 0 : i32
    %c0_i32_0 = arith.constant 0 : i32
    %c0_i32_1 = arith.constant 0 : i32
    return %c0_i32, %c0_i32_0 : i32, i32
  }
  func.func @transform_5(%arg0: i32) -> (i32, i32) {
    %c0_i32 = arith.constant 0 : i32
    %c0_i32_0 = arith.constant 0 : i32
    return %arg0, %c0_i32 : i32, i32
  }
}

</mosaic_0001>

<llo_original>
// kernel: actor_forward.1
$region0: #{actor_forward.1}
  #allocation0 [shape = 'u32[]', space=smem, size = 0x4, offset = 0x4, fixed_abs, tag = 'smem constant byte address 0x4 - core index']
  #allocation1 [shape = 'u32[72,128]{1,0:T(1,128)}', space=vmem, size = 0x9000, scoped, tag = 'internal scratch']
  #allocation2 [shape = 'f32[1,1]{1,0:T(1,128)S(6)}', space=smem, size = 0x200, scoped, tag = 'scoped memory for actor_forward.1']
  %s0 = inlined_call_operand.vmem [shape: bf16[8,48], index: 0, kind: input, shape index: {}]
  %s1 = inlined_call_operand.vmem [shape: bf16[48,128], index: 1, kind: input, shape index: {}]
  %s2 = inlined_call_operand.vmem [shape: f32[1,128], index: 2, kind: input, shape index: {}]
  %s3 = inlined_call_operand.vmem [shape: f32[1,128], index: 3, kind: input, shape index: {}]
  %s4 = inlined_call_operand.<no memory space> [shape: f32[1,1], index: 4, kind: input, shape index: {}]
  %s5 = inlined_call_operand.vmem [shape: f32[8,1], index: 5, kind: output, shape index: {}]
  %s6 = sld [smem:[#allocation0]]
  $region30: #{actor_forward.1} parent=0
    _
  %s8 = ssub.s32 1, %s6
  %s9 = scalar_select 0, %s8, %s6
  %10 = sst [smem:[#allocation2]] %s4
  // Predicated region
  $region2: #{actor_forward.1} parent=0 // pred_check
    _
  $region3: #{actor_forward.1} parent=0 // pred_check_branch
    %12 = sbr.rel (0) target = $region5
  $region4: #{actor_forward.1} parent=0 // pred_region
    _
  $region5: #{actor_forward.1} parent=0 // pred_fallthru
    _
  // Predicated region
  $region6: #{actor_forward.1} parent=0 // pred_check
    _
  $region7: #{actor_forward.1} parent=0 // pred_check_branch
    %14 = sbr.rel (0) target = $region9
  $region8: #{actor_forward.1} parent=0 // pred_region
    _
  $region9: #{actor_forward.1} parent=0 // pred_fallthru
    _
  // Predicated region
  $region10: #{actor_forward.1} parent=0 // pred_check
    _
  $region11: #{actor_forward.1} parent=0 // pred_check_branch
    %16 = sbr.rel (0) target = $region13
  $region12: #{actor_forward.1} parent=0 // pred_region
    _
  $region13: #{actor_forward.1} parent=0 // pred_fallthru
    _
  // Predicated region
  $region14: #{actor_forward.1} parent=0 // pred_check
    _
  $region15: #{actor_forward.1} parent=0 // pred_check_branch
    %18 = sbr.rel (0) target = $region17
  $region16: #{actor_forward.1} parent=0 // pred_region
    _
  $region17: #{actor_forward.1} parent=0 // pred_fallthru
    _
  // Predicated region
  $region18: #{actor_forward.1} parent=0 // pred_check
    _
  $region19: #{actor_forward.1} parent=0 // pred_check_branch
    %20 = sbr.rel (0) target = $region21
  $region20: #{actor_forward.1} parent=0 // pred_region
    _
  $region21: #{actor_forward.1} parent=0 // pred_fallthru
    _
  %v22 = vld [vmem:[%s0] sm:$0xf]
  %v23 = vld [vmem:[%s1] sm:$0xf]
  %v24 = vld [vmem:[%s1 + $0x4] sm:$0xf]
  %v25 = vld [vmem:[%s1 + $0x8] sm:$0xf]
  %v26 = vld [vmem:[%s1 + $0xc] sm:$0xf]
  %v27 = vld [vmem:[%s1 + $0x10] sm:$0xf]
  %v28 = vld [vmem:[%s1 + $0x14] sm:$0xf]
  %v29 = vld [vmem:[%s2] sm:$0x1]
  %v31 = vperm.slane %v29, 0
  %v39 = vunpack.c.l.b16 %v23
  %v40 = vunpack.c.l.b16 %v24
  %v41 = vunpack.c.l.b16 %v25
  %v42 = vunpack.c.l.b16 %v26
  %v43 = vunpack.c.l.b16 %v27
  %v44 = vunpack.c.l.b16 %v28
  %v45 = vpack.c.b16 %v40, %v39
  %v46 = vpack.c.b16 %v42, %v41
  %v47 = vpack.c.b16 %v44, %v43
  %vm51 = vcmask 392192
  %v53 = vsel %vm51, %v22, 0
  %55 = vmatpush.bf16.msra.mxu0 0
  %56 = vmatpush.bf16.msra.mxu0 0
  %57 = vmatpush.bf16.msra.mxu0 0
  %58 = vmatpush.bf16.msra.mxu0 0
  %59 = vmatpush.bf16.msra.mxu0 0
  %60 = vmatpush.bf16.msra.mxu0 %v47
  %61 = vmatpush.bf16.msra.mxu0 %v46
  %62 = vmatpush.bf16.msra.mxu0 %v45
  %63 = vmatmul.bf16.gmra.mxu0 %v53
  %v64 = vpop.f32.mrf.mxu0
  %v65 = vadd.f32 %v31, %v64
  %v66 = vpop.f32.mrf.mxu0
  %67 = vdwg.mxu0
  %v68 = vmax.f32 %v65, 0.0
  %v69 = vld [vmem:[%s3] sm:$0x1]
  %v71 = vperm.slane %v69, 0
  %v73 = vmul.f32 %v68, %v71
  %74 = vadd.xlane.f32.xlu0 %v73
  %v75 = vpop.xlane.xlu0 %74
  %s76 = sld [smem:[#allocation2]]
  %v77 = vstv %s76
  %v78 = vadd.f32 %v75, %v77
  %v79 = vtanh.pop %v78
  %vm80 = vcmask 7168
  %81 = vst.msk [vmem:[%s5] sm:$0xff] %vm80, %v79
  // Predicated region
  $region22: #{actor_forward.1} parent=0 // pred_check
    _
  $region23: #{actor_forward.1} parent=0 // pred_check_branch
    %83 = sbr.rel (0) target = $region25
  $region24: #{actor_forward.1} parent=0 // pred_region
    _
  $region25: #{actor_forward.1} parent=0 // pred_fallthru
    _
  // Predicated region
  $region26: #{actor_forward.1} parent=0 // pred_check
    _
  $region27: #{actor_forward.1} parent=0 // pred_check_branch
    %85 = sbr.rel (0) target = $region29
  $region28: #{actor_forward.1} parent=0 // pred_region
    _
  $region29: #{actor_forward.1} parent=0 // pred_fallthru
    _

</llo_original>
